<compile_context>
chip_gen: v6e
topology: v6e:2x2x1
jax: 0.10.0
libtpu: 0.0.40
codegen_flags: <defaults>
</compile_context>

<pallas_src>
import jax
import jax.numpy as jnp
from jax import lax
from jax.experimental import pallas as pl
from jax.experimental.pallas import tpu as pltpu


def mlp_kernel(x_ref,                  # [TB, in_dim] f32  (natural layout)
               w1_ref, b1_ref,         # [H1, in_dim] bf16, [H1, 1] f32
               w2_ref, b2_ref,         # [H2, H1]     bf16, [H2, 1] f32
               w3d_ref, b3d_ref,       # [1, H2] bf16 (folded class-diff / T), [1,1] f32
               out_ref):               # [1, TB] f32  -- probs[:, 1], lane-dense
    cd = w1_ref.dtype
    xb = x_ref[...].astype(cd)         # cast in-kernel; x crosses HBM once as f32

    # Layer 1: W1 @ x^T -- contract in_dim of both operands -> [H1, TB]
    # (batch lands on the lane axis; MXU matmul, f32 accumulate, VPU ReLU).
    h1 = lax.dot_general(w1_ref[...], xb, (((1,), (1,)), ((), ())),
                         preferred_element_type=jnp.float32) + b1_ref[...]
    h1 = jnp.maximum(h1, 0.0).astype(cd)

    # Layer 2: W2 @ h1 + b2, ReLU
    h2 = jnp.dot(w2_ref[...], h1, preferred_element_type=jnp.float32) + b2_ref[...]
    h2 = jnp.maximum(h2, 0.0).astype(cd)

    # Output: softmax(logits/T)[:, 1] == sigmoid((logit1 - logit0)/T); the
    # class-difference and 1/T are pre-folded into w3d/b3d by the wrapper.
    z = jnp.dot(w3d_ref[...], h2, preferred_element_type=jnp.float32) + b3d_ref[...]
    out_ref[...] = 1.0 / (1.0 + jnp.exp(-z))


def mlp_forward(x, params, temperature=1.0, block_b=None,
                compute_dtype=jnp.bfloat16):
    """x: [B, input_dim] float32. params in torch layout (w:[out,in], b:[out]).
    Returns probs[:, 1] as [B] float32."""
    w1, b1, w2, b2, w3, b3 = params
    B, in_dim = x.shape
    h1_dim = w1.shape[0]
    h2_dim = w2.shape[0]
    assert w3.shape[0] == 2  # TODO(synk): output_dim==1 path (raw logits) not implemented

    # Host-side folding: class-1-minus-class-0 difference and 1/temperature.
    inv_t = jnp.float32(1.0 / temperature)
    w3d = (w3[1:2, :] - w3[0:1, :]) * inv_t                   # [1, H2]
    b3d = ((b3[1:2] - b3[0:1]) * inv_t).reshape(1, 1)         # [1, 1]

    # Batch-tile size: big lane tiles amortize the per-step pipeline overhead;
    # cap the x tile to ~2 MiB of VMEM (double-buffered by Pallas).
    if block_b is None:
        target = 8192
        vmem_cap = max(128, (2 * 1024 * 1024 // max(1, in_dim * 4)) // 128 * 128)
        target = min(target, vmem_cap)
        n_steps = max(1, (B + target - 1) // target)
        block_b = (((B + n_steps - 1) // n_steps) + 127) // 128 * 128

    padded = ((B + block_b - 1) // block_b) * block_b
    x = x.astype(jnp.float32)
    if padded != B:
        x = jnp.pad(x, ((0, padded - B), (0, 0)))
    grid = (padded // block_b,)

    const = lambda i: (0, 0)
    out = pl.pallas_call(
        mlp_kernel,
        out_shape=jax.ShapeDtypeStruct((1, padded), jnp.float32),
        grid=grid,
        in_specs=[
            pl.BlockSpec((block_b, in_dim), lambda i: (i, 0)),   # x tile (pipelined)
            pl.BlockSpec((h1_dim, in_dim), const),               # resident weights
            pl.BlockSpec((h1_dim, 1), const),
            pl.BlockSpec((h2_dim, h1_dim), const),
            pl.BlockSpec((h2_dim, 1), const),
            pl.BlockSpec((1, h2_dim), const),
            pl.BlockSpec((1, 1), const),
        ],
        out_specs=pl.BlockSpec((1, block_b), lambda i: (0, i)),  # lane-dense output row
        compiler_params=pltpu.CompilerParams(
            dimension_semantics=("parallel",)),                  # megacore on v7x
    )(
        x,
        w1.astype(compute_dtype),
        b1.reshape(-1, 1).astype(jnp.float32),
        w2.astype(compute_dtype),
        b2.reshape(-1, 1).astype(jnp.float32),
        w3d.astype(compute_dtype),
        b3d.astype(jnp.float32),
    )
    return out[0, :B]


def init_params(key, input_dim, hidden_sizes, output_dim):
    """Torch-layout params. Weights [out, in]: xavier-normal (reset_parameters);
    biases [out]: torch Linear default uniform(-1/sqrt(fan_in), 1/sqrt(fan_in))."""
    dims = [input_dim] + list(hidden_sizes) + [output_dim]
    params = []
    for i in range(len(dims) - 1):
        fan_in, fan_out = dims[i], dims[i + 1]
        key, kw, kb = jax.random.split(key, 3)
        std = (2.0 / (fan_in + fan_out)) ** 0.5
        w = std * jax.random.normal(kw, (fan_out, fan_in), dtype=jnp.float32)
        bound = 1.0 / (fan_in ** 0.5)
        b = jax.random.uniform(kb, (fan_out,), dtype=jnp.float32,
                               minval=-bound, maxval=bound)
        params += [w, b]
    return tuple(params)


if __name__ == "__main__":
    key = jax.random.PRNGKey(0)
    batch, input_dim = 8, 32
    hidden_sizes = [50, 50]
    output_dim = 2
    temperature = 0.7

    key, kx, kp = jax.random.split(key, 3)
    x = jax.random.normal(kx, (batch, input_dim), dtype=jnp.float32)
    params = init_params(kp, input_dim, hidden_sizes, output_dim)

    out = jax.block_until_ready(mlp_forward(x, params, temperature=temperature))
    assert out.shape == (batch,)
    assert bool(jnp.all(jnp.isfinite(out)))

    w1, b1, w2, b2, w3, b3 = params

    # (1) Semantics check vs. the original-module math in f32 (loose tolerance
    #     because the kernel computes the matmuls in bf16).
    h = jnp.maximum(x @ w1.T + b1, 0.0)
    h = jnp.maximum(h @ w2.T + b2, 0.0)
    logits = (h @ w3.T + b3) / temperature
    ref = jax.nn.softmax(logits, axis=-1)[:, 1]
    assert float(jnp.max(jnp.abs(out - ref))) < 2e-2, "semantic mismatch"

    # (2) Tight check vs. an exact replica of the kernel's bf16/f32 math.
    cd = jnp.bfloat16
    q = lambda a: a.astype(cd).astype(jnp.float32)
    inv_t = 1.0 / temperature
    w3d_r = q((w3[1:2, :] - w3[0:1, :]) * inv_t)
    b3d_r = (b3[1] - b3[0]) * inv_t
    h1_r = jnp.maximum(q(w1) @ q(x).T + b1[:, None], 0.0)
    h2_r = jnp.maximum(q(w2) @ q(h1_r) + b2[:, None], 0.0)
    z_r = (w3d_r @ q(h2_r) + b3d_r)[0]
    tight_ref = 1.0 / (1.0 + jnp.exp(-z_r))
    assert float(jnp.max(jnp.abs(out - tight_ref))) < 1e-3, "kernel math mismatch"

    print("KERNEL_OK")
</pallas_src>

<mosaic_0001>
module attributes {stable_mosaic.version = 11 : i64} {
  func.func @mlp_kernel(%arg0: i32, %arg1: memref<128x32xf32, #tpu.memory_space<vmem>>, %arg2: memref<50x32xbf16, #tpu.memory_space<vmem>>, %arg3: memref<50x1xf32, #tpu.memory_space<vmem>>, %arg4: memref<50x50xbf16, #tpu.memory_space<vmem>>, %arg5: memref<50x1xf32, #tpu.memory_space<vmem>>, %arg6: memref<1x50xbf16, #tpu.memory_space<vmem>>, %arg7: memref<1x1xf32, #tpu.memory_space<vmem>>, %arg8: memref<1x128xf32, #tpu.memory_space<vmem>>) attributes {dimension_semantics = [#tpu.dimension_semantics<parallel>], iteration_bounds = array<i64: 1>, scalar_prefetch = 0 : i64, scratch_operands = 0 : i64, tpu.core_type = #tpu.core_type<tc>, window_params = [{transform_indices = @transform_0, window_bounds = array<i64: 128, 32>}, {pipeline_mode = #tpu.pipeline_mode<synchronous>, transform_indices = @transform_1, window_bounds = array<i64: 50, 32>}, {pipeline_mode = #tpu.pipeline_mode<synchronous>, transform_indices = @transform_2, window_bounds = array<i64: 50, 1>}, {pipeline_mode = #tpu.pipeline_mode<synchronous>, transform_indices = @transform_3, window_bounds = array<i64: 50, 50>}, {pipeline_mode = #tpu.pipeline_mode<synchronous>, transform_indices = @transform_4, window_bounds = array<i64: 50, 1>}, {pipeline_mode = #tpu.pipeline_mode<synchronous>, transform_indices = @transform_5, window_bounds = array<i64: 1, 50>}, {pipeline_mode = #tpu.pipeline_mode<synchronous>, transform_indices = @transform_6, window_bounds = array<i64: 1, 1>}, {transform_indices = @transform_7, window_bounds = array<i64: 1, 128>}]} {
    %c0 = arith.constant 0 : index
    %c0_0 = arith.constant 0 : index
    %0 = vector.load %arg1[%c0, %c0_0] : memref<128x32xf32, #tpu.memory_space<vmem>>, vector<128x32xf32>
    %1 = arith.truncf %0 : vector<128x32xf32> to vector<128x32xbf16>
    %c0_1 = arith.constant 0 : index
    %c0_2 = arith.constant 0 : index
    %2 = vector.load %arg2[%c0_1, %c0_2] : memref<50x32xbf16, #tpu.memory_space<vmem>>, vector<50x32xbf16>
    %cst = arith.constant dense<0.000000e+00> : vector<50x128xf32>
    %3 = tpu.matmul %2, %1, %cst {dimension_numbers = #tpu.dot_dimension_numbers<[1], [1], [0], [0], [0, 0, 1, 0], [], []>} : vector<50x32xbf16>, vector<128x32xbf16>, vector<50x128xf32> -> vector<50x128xf32>
    %c0_3 = arith.constant 0 : index
    %c0_4 = arith.constant 0 : index
    %4 = vector.load %arg3[%c0_3, %c0_4] : memref<50x1xf32, #tpu.memory_space<vmem>>, vector<50x1xf32>
    %5 = vector.broadcast %4 : vector<50x1xf32> to vector<50x128xf32>
    %6 = arith.addf %3, %5 : vector<50x128xf32>
    %cst_5 = arith.constant 0.000000e+00 : f32
    %7 = vector.broadcast %cst_5 : f32 to vector<50x128xf32>
    %8 = arith.maximumf %6, %7 : vector<50x128xf32>
    %9 = arith.truncf %8 : vector<50x128xf32> to vector<50x128xbf16>
    %c0_6 = arith.constant 0 : index
    %c0_7 = arith.constant 0 : index
    %10 = vector.load %arg4[%c0_6, %c0_7] : memref<50x50xbf16, #tpu.memory_space<vmem>>, vector<50x50xbf16>
    %cst_8 = arith.constant dense<0.000000e+00> : vector<50x128xf32>
    %11 = tpu.matmul %10, %9, %cst_8 {dimension_numbers = #tpu.dot_dimension_numbers<[1], [0], [0], [1], [0, 0, 1, 1], [], []>} : vector<50x50xbf16>, vector<50x128xbf16>, vector<50x128xf32> -> vector<50x128xf32>
    %c0_9 = arith.constant 0 : index
    %c0_10 = arith.constant 0 : index
    %12 = vector.load %arg5[%c0_9, %c0_10] : memref<50x1xf32, #tpu.memory_space<vmem>>, vector<50x1xf32>
    %13 = vector.broadcast %12 : vector<50x1xf32> to vector<50x128xf32>
    %14 = arith.addf %11, %13 : vector<50x128xf32>
    %cst_11 = arith.constant 0.000000e+00 : f32
    %15 = vector.broadcast %cst_11 : f32 to vector<50x128xf32>
    %16 = arith.maximumf %14, %15 : vector<50x128xf32>
    %17 = arith.truncf %16 : vector<50x128xf32> to vector<50x128xbf16>
    %c0_12 = arith.constant 0 : index
    %c0_13 = arith.constant 0 : index
    %18 = vector.load %arg6[%c0_12, %c0_13] : memref<1x50xbf16, #tpu.memory_space<vmem>>, vector<1x50xbf16>
    %cst_14 = arith.constant dense<0.000000e+00> : vector<1x128xf32>
    %19 = tpu.matmul %18, %17, %cst_14 {dimension_numbers = #tpu.dot_dimension_numbers<[1], [0], [0], [1], [0, 0, 1, 1], [], []>} : vector<1x50xbf16>, vector<50x128xbf16>, vector<1x128xf32> -> vector<1x128xf32>
    %c0_15 = arith.constant 0 : index
    %c0_16 = arith.constant 0 : index
    %20 = vector.load %arg7[%c0_15, %c0_16] : memref<1x1xf32, #tpu.memory_space<vmem>>, vector<1x1xf32>
    %21 = vector.broadcast %20 : vector<1x1xf32> to vector<1x128xf32>
    %22 = arith.addf %19, %21 : vector<1x128xf32>
    %cst_17 = arith.constant 0.000000e+00 : f32
    %23 = vector.broadcast %cst_17 : f32 to vector<1x128xf32>
    %24 = arith.subf %23, %22 : vector<1x128xf32>
    %25 = math.exp %24 : vector<1x128xf32>
    %cst_18 = arith.constant 1.000000e+00 : f32
    %26 = vector.broadcast %cst_18 : f32 to vector<1x128xf32>
    %27 = arith.addf %26, %25 : vector<1x128xf32>
    %cst_19 = arith.constant 1.000000e+00 : f32
    %28 = vector.broadcast %cst_19 : f32 to vector<1x128xf32>
    %29 = arith.divf %28, %27 : vector<1x128xf32>
    %c0_20 = arith.constant 0 : index
    %c0_21 = arith.constant 0 : index
    %30 = vector.load %arg8[%c0_20, %c0_21] : memref<1x128xf32, #tpu.memory_space<vmem>>, vector<1x128xf32>
    tpu.vector_store %arg8[%c0_20, %c0_21], %29 {strides = array<i32>} : memref<1x128xf32, #tpu.memory_space<vmem>>, vector<1x128xf32>,
    return
  }
  func.func @transform_0(%arg0: i32) -> (i32, i32) {
    %c0_i32 = arith.constant 0 : i32
    %c0_i32_0 = arith.constant 0 : i32
    return %arg0, %c0_i32 : i32, i32
  }
  func.func @transform_1(%arg0: i32) -> (i32, i32) {
    %c0_i32 = arith.constant 0 : i32
    %c0_i32_0 = arith.constant 0 : i32
    %c0_i32_1 = arith.constant 0 : i32
    return %c0_i32, %c0_i32_0 : i32, i32
  }
  func.func @transform_2(%arg0: i32) -> (i32, i32) {
    %c0_i32 = arith.constant 0 : i32
    %c0_i32_0 = arith.constant 0 : i32
    %c0_i32_1 = arith.constant 0 : i32
    return %c0_i32, %c0_i32_0 : i32, i32
  }
  func.func @transform_3(%arg0: i32) -> (i32, i32) {
    %c0_i32 = arith.constant 0 : i32
    %c0_i32_0 = arith.constant 0 : i32
    %c0_i32_1 = arith.constant 0 : i32
    return %c0_i32, %c0_i32_0 : i32, i32
  }
  func.func @transform_4(%arg0: i32) -> (i32, i32) {
    %c0_i32 = arith.constant 0 : i32
    %c0_i32_0 = arith.constant 0 : i32
    %c0_i32_1 = arith.constant 0 : i32
    return %c0_i32, %c0_i32_0 : i32, i32
  }
  func.func @transform_5(%arg0: i32) -> (i32, i32) {
    %c0_i32 = arith.constant 0 : i32
    %c0_i32_0 = arith.constant 0 : i32
    %c0_i32_1 = arith.constant 0 : i32
    return %c0_i32, %c0_i32_0 : i32, i32
  }
  func.func @transform_6(%arg0: i32) -> (i32, i32) {
    %c0_i32 = arith.constant 0 : i32
    %c0_i32_0 = arith.constant 0 : i32
    %c0_i32_1 = arith.constant 0 : i32
    return %c0_i32, %c0_i32_0 : i32, i32
  }
  func.func @transform_7(%arg0: i32) -> (i32, i32) {
    %c0_i32 = arith.constant 0 : i32
    %c0_i32_0 = arith.constant 0 : i32
    return %c0_i32, %arg0 : i32, i32
  }
}

</mosaic_0001>

<llo_original>
// kernel: tpu_custom_call.1
$region0: #{tpu_custom_call.1}
  #allocation0 [shape = 'u32[]', space=smem, size = 0x4, offset = 0x4, fixed_abs, tag = 'smem constant byte address 0x4 - core index']
  #allocation1 [shape = 'u32[144,128]{1,0:T(1,128)}', space=vmem, size = 0x12000, scoped, tag = 'internal scratch']
  #allocation2 [shape = 'f32[1,1]{1,0:T(1,128)S(1)}', space=vmem, size = 0x200, scoped, tag = 'scoped memory for tpu_custom_call.1']
  %s0 = inlined_call_operand.vmem [shape: f32[128,32], index: 0, kind: input, shape index: {}]
  %s1 = inlined_call_operand.vmem [shape: bf16[50,32], index: 1, kind: input, shape index: {}]
  %s2 = inlined_call_operand.vmem [shape: f32[50,1], index: 2, kind: input, shape index: {}]
  %s3 = inlined_call_operand.vmem [shape: bf16[50,50], index: 3, kind: input, shape index: {}]
  %s4 = inlined_call_operand.vmem [shape: f32[50,1], index: 4, kind: input, shape index: {}]
  %s5 = inlined_call_operand.vmem [shape: bf16[1,50], index: 5, kind: input, shape index: {}]
  %s6 = inlined_call_operand.<no memory space> [shape: f32[1,1], index: 6, kind: input, shape index: {}]
  %s7 = inlined_call_operand.hbm [shape: f32[1,128], index: 7, kind: output, shape index: {}]
  %s8 = sld [smem:[#allocation0]]
  $region38: #{tpu_custom_call.1} parent=0
    _
  %s10 = ssub.s32 1, %s8
  %s11 = scalar_select 0, %s10, %s8
  %v12 = vstv %s6
  %13 = vst [vmem:[#allocation2] sm:$0x1] %v12
  $region1: #{tpu_custom_call.1} parent=0
    #allocation3 [shape = 'u8[512]{0}', space=vmem, size = 0x400, scoped, tag = 'output window, operand 0, single buffered']
    #allocation4 [shape = 's32[1]{0}', space=sflag, size = 0x4, scoped, tag = 'scoped memory for tpu_custom_call.1']
    %14 = vsyncpa [#allocation4], 0
    // Predicated region
    $region2: #{tpu_custom_call.1} parent=1 // pred_check
      _
    $region3: #{tpu_custom_call.1} parent=1 // pred_check_branch
      %16 = sbr.rel (0) target = $region5
    $region4: #{tpu_custom_call.1} parent=1 // pred_region
      _
    $region5: #{tpu_custom_call.1} parent=1 // pred_fallthru
      _
    // Predicated region
    $region6: #{tpu_custom_call.1} parent=1 // pred_check
      _
    $region7: #{tpu_custom_call.1} parent=1 // pred_check_branch
      %18 = sbr.rel (0) target = $region9
    $region8: #{tpu_custom_call.1} parent=1 // pred_region
      _
    $region9: #{tpu_custom_call.1} parent=1 // pred_fallthru
      _
    // Predicated region
    $region10: #{tpu_custom_call.1} parent=1 // pred_check
      _
    $region11: #{tpu_custom_call.1} parent=1 // pred_check_branch
      %20 = sbr.rel (0) target = $region13
    $region12: #{tpu_custom_call.1} parent=1 // pred_region
      _
    $region13: #{tpu_custom_call.1} parent=1 // pred_fallthru
      _
    // Predicated region
    $region14: #{tpu_custom_call.1} parent=1 // pred_check
      _
    $region15: #{tpu_custom_call.1} parent=1 // pred_check_branch
      %22 = sbr.rel (0) target = $region17
    $region16: #{tpu_custom_call.1} parent=1 // pred_region
      _
    $region17: #{tpu_custom_call.1} parent=1 // pred_fallthru
      _
    // Predicated region
    $region18: #{tpu_custom_call.1} parent=1 // pred_check
      _
    $region19: #{tpu_custom_call.1} parent=1 // pred_check_branch
      %24 = sbr.rel (0) target = $region21
    $region20: #{tpu_custom_call.1} parent=1 // pred_region
      _
    $region21: #{tpu_custom_call.1} parent=1 // pred_fallthru
      _
    // Predicated region
    $region22: #{tpu_custom_call.1} parent=1 // pred_check
      _
    $region23: #{tpu_custom_call.1} parent=1 // pred_check_branch
      %26 = sbr.rel (0) target = $region25
    $region24: #{tpu_custom_call.1} parent=1 // pred_region
      _
    $region25: #{tpu_custom_call.1} parent=1 // pred_fallthru
      _
    // Predicated region
    $region26: #{tpu_custom_call.1} parent=1 // pred_check
      _
    $region27: #{tpu_custom_call.1} parent=1 // pred_check_branch
      %28 = sbr.rel (0) target = $region29
    $region28: #{tpu_custom_call.1} parent=1 // pred_region
      _
    $region29: #{tpu_custom_call.1} parent=1 // pred_fallthru
      _
    %v30 = vld [vmem:[%s0] sm:$0xff]
    %v31 = vld [vmem:[%s0 + $0x8] sm:$0xff]
    %v32 = vld [vmem:[%s0 + $0x10] sm:$0xff]
    %v33 = vld [vmem:[%s0 + $0x18] sm:$0xff]
    %v34 = vld [vmem:[%s0 + $0x20] sm:$0xff]
    %v35 = vld [vmem:[%s0 + $0x28] sm:$0xff]
    %v36 = vld [vmem:[%s0 + $0x30] sm:$0xff]
    %v37 = vld [vmem:[%s0 + $0x38] sm:$0xff]
    %v38 = vld [vmem:[%s0 + $0x40] sm:$0xff]
    %v39 = vld [vmem:[%s0 + $0x48] sm:$0xff]
    %v40 = vld [vmem:[%s0 + $0x50] sm:$0xff]
    %v41 = vld [vmem:[%s0 + $0x58] sm:$0xff]
    %v42 = vld [vmem:[%s0 + $0x60] sm:$0xff]
    %v43 = vld [vmem:[%s0 + $0x68] sm:$0xff]
    %v44 = vld [vmem:[%s0 + $0x70] sm:$0xff]
    %v45 = vld [vmem:[%s0 + $0x78] sm:$0xff]
    %v46 = vpack.c.bf16 %v31, %v30
    %v47 = vpack.c.bf16 %v33, %v32
    %v48 = vpack.c.bf16 %v35, %v34
    %v49 = vpack.c.bf16 %v37, %v36
    %v50 = vpack.c.bf16 %v39, %v38
    %v51 = vpack.c.bf16 %v41, %v40
    %v52 = vpack.c.bf16 %v43, %v42
    %v53 = vpack.c.bf16 %v45, %v44
    %v54 = vld [vmem:[%s1] sm:$0xf]
    %v55 = vld [vmem:[%s1 + $0x4] sm:$0xf]
    %v56 = vld [vmem:[%s1 + $0x8] sm:$0xf]
    %v57 = vld [vmem:[%s1 + $0xc] sm:$0xf]
    %v58 = vld [vmem:[%s1 + $0x10] sm:$0xf]
    %v59 = vld [vmem:[%s1 + $0x14] sm:$0xf]
    %v60 = vld [vmem:[%s1 + $0x18] sm:$0x1]
    %v61 = vld [vmem:[%s2] sm:$0xff]
    %v62 = vld [vmem:[%s2 + $0x8] sm:$0xff]
    %v63 = vld [vmem:[%s2 + $0x10] sm:$0xff]
    %v64 = vld [vmem:[%s2 + $0x18] sm:$0xff]
    %v65 = vld [vmem:[%s2 + $0x20] sm:$0xff]
    %v66 = vld [vmem:[%s2 + $0x28] sm:$0xff]
    %v67 = vld [vmem:[%s2 + $0x30] sm:$0x3]
    %69 = vset.pattern.permute.xlu0 0
    %70 = vperm.xlu0 %69, %v61
    %v71 = vpop.permute.xlu0 %70
    %74 = vset.pattern.permute.xlu0 0
    %75 = vperm.xlu0 %74, %v62
    %v76 = vpop.permute.xlu0 %75
    %79 = vset.pattern.permute.xlu0 0
    %80 = vperm.xlu0 %79, %v63
    %v81 = vpop.permute.xlu0 %80
    %84 = vset.pattern.permute.xlu0 0
    %85 = vperm.xlu0 %84, %v64
    %v86 = vpop.permute.xlu0 %85
    %89 = vset.pattern.permute.xlu0 0
    %90 = vperm.xlu0 %89, %v65
    %v91 = vpop.permute.xlu0 %90
    %94 = vset.pattern.permute.xlu0 0
    %95 = vperm.xlu0 %94, %v66
    %v96 = vpop.permute.xlu0 %95
    %99 = vset.pattern.permute.xlu0 0
    %100 = vperm.xlu0 %99, %v67
    %v101 = vpop.permute.xlu0 %100
    %v110 = vunpack.c.l.b16 %v54
    %v111 = vunpack.c.l.b16 %v55
    %v112 = vunpack.c.l.b16 %v56
    %v113 = vunpack.c.l.b16 %v57
    %v114 = vunpack.c.l.b16 %v58
    %v115 = vunpack.c.l.b16 %v59
    %v116 = vunpack.c.l.b16 %v60
    %v117 = vpack.c.b16 %v111, %v110
    %v118 = vpack.c.b16 %v113, %v112
    %v119 = vpack.c.b16 %v115, %v114
    %v120 = vpack.c.b16 %v116, %v116
    %vm121 = vcmask 261120
    %v123 = vsel %vm121, %v117, 0
    %v126 = vsel %vm121, %v118, 0
    %v129 = vsel %vm121, %v119, 0
    %v132 = vsel %vm121, %v120, 0
    %v135 = vsel %vm121, %v46, 0
    %v138 = vsel %vm121, %v47, 0
    %v141 = vsel %vm121, %v48, 0
    %v144 = vsel %vm121, %v49, 0
    %v147 = vsel %vm121, %v50, 0
    %v150 = vsel %vm121, %v51, 0
    %v153 = vsel %vm121, %v52, 0
    %v156 = vsel %vm121, %v53, 0
    %158 = vmatprep.subr.bf16.mxu0 0
    %159 = vmatpush1.bf16.xpose.msra.mxu0 %v156
    %160 = vmatprep.subr.bf16.mxu0 0
    %161 = vmatpush1.bf16.xpose.msra.mxu0 %v153
    %162 = vmatprep.subr.bf16.mxu0 0
    %163 = vmatpush1.bf16.xpose.msra.mxu0 %v150
    %164 = vmatprep.subr.bf16.mxu0 0
    %165 = vmatpush1.bf16.xpose.msra.mxu0 %v147
    %166 = vmatprep.subr.bf16.mxu0 0
    %167 = vmatpush1.bf16.xpose.msra.mxu0 %v144
    %168 = vmatprep.subr.bf16.mxu0 0
    %169 = vmatpush1.bf16.xpose.msra.mxu0 %v141
    %170 = vmatprep.subr.bf16.mxu0 0
    %171 = vmatpush1.bf16.xpose.msra.mxu0 %v138
    %172 = vmatprep.subr.bf16.mxu0 0
    %173 = vmatpush1.bf16.xpose.msra.mxu0 %v135
    %174 = vmatprep.subr.bf16.mxu0 0
    %175 = vmatpush2.bf16.xpose.msra.mxu0 0
    %176 = vmatprep.subr.bf16.mxu0 0
    %177 = vmatpush2.bf16.xpose.msra.mxu0 0
    %178 = vmatprep.subr.bf16.mxu0 0
    %179 = vmatpush2.bf16.xpose.msra.mxu0 0
    %180 = vmatprep.subr.bf16.mxu0 0
    %181 = vmatpush2.bf16.xpose.msra.mxu0 0
    %182 = vmatprep.subr.bf16.mxu0 0
    %183 = vmatpush2.bf16.xpose.msra.mxu0 0
    %184 = vmatprep.subr.bf16.mxu0 0
    %185 = vmatpush2.bf16.xpose.msra.mxu0 0
    %186 = vmatprep.subr.bf16.mxu0 0
    %187 = vmatpush2.bf16.xpose.msra.mxu0 0
    %188 = vmatprep.subr.bf16.mxu0 0
    %189 = vmatpush2.bf16.xpose.msra.mxu0 0
    %190 = vmatprep.mubr.bf16.mxu0 0
    %191 = vmatmul.mubr.bf16.gmra.mxu0 %v123
    %v192 = vpop.f32.mrf.mxu0
    %v193 = vadd.f32 %v71, %v192
    %v194 = vpop.f32.mrf.mxu0
    %v195 = vpop.f32.mrf.mxu0
    %v196 = vadd.f32 %v76, %v195
    %v197 = vpop.f32.mrf.mxu0
    %198 = vmatprep.mubr.bf16.mxu0 0
    %199 = vmatmul.mubr.bf16.gmra.mxu0 %v126
    %v200 = vpop.f32.mrf.mxu0
    %v201 = vadd.f32 %v81, %v200
    %v202 = vpop.f32.mrf.mxu0
    %v203 = vpop.f32.mrf.mxu0
    %v204 = vadd.f32 %v86, %v203
    %v205 = vpop.f32.mrf.mxu0
    %206 = vmatprep.mubr.bf16.mxu0 0
    %207 = vmatmul.mubr.bf16.gmra.mxu0 %v129
    %v208 = vpop.f32.mrf.mxu0
    %v209 = vadd.f32 %v91, %v208
    %v210 = vpop.f32.mrf.mxu0
    %v211 = vpop.f32.mrf.mxu0
    %v212 = vadd.f32 %v96, %v211
    %v213 = vpop.f32.mrf.mxu0
    %214 = vmatprep.mubr.bf16.mxu0 0
    %215 = vmatmul.mubr.bf16.gmra.mxu0 %v132
    %v216 = vpop.f32.mrf.mxu0
    %v217 = vadd.f32 %v101, %v216
    %v218 = vpop.f32.mrf.mxu0
    %v219 = vpop.f32.mrf.mxu0
    %v220 = vpop.f32.mrf.mxu0
    %221 = vdwg.mxu0
    %v222 = vmax.f32 %v193, 0.0
    %v223 = vmax.f32 %v196, 0.0
    %v224 = vmax.f32 %v201, 0.0
    %v225 = vmax.f32 %v204, 0.0
    %v226 = vmax.f32 %v209, 0.0
    %v227 = vmax.f32 %v212, 0.0
    %v228 = vmax.f32 %v217, 0.0
    %v229 = vpack.c.bf16 %v223, %v222
    %v230 = vpack.c.bf16 %v225, %v224
    %v231 = vpack.c.bf16 %v227, %v226
    %v232 = vpack.c.bf16 %v228, %v228
    %v233 = vld [vmem:[%s3] sm:$0xf]
    %v234 = vld [vmem:[%s3 + $0x4] sm:$0xf]
    %v235 = vld [vmem:[%s3 + $0x8] sm:$0xf]
    %v236 = vld [vmem:[%s3 + $0xc] sm:$0xf]
    %v237 = vld [vmem:[%s3 + $0x10] sm:$0xf]
    %v238 = vld [vmem:[%s3 + $0x14] sm:$0xf]
    %v239 = vld [vmem:[%s3 + $0x18] sm:$0x1]
    %v240 = vld [vmem:[%s4] sm:$0xff]
    %v241 = vld [vmem:[%s4 + $0x8] sm:$0xff]
    %v242 = vld [vmem:[%s4 + $0x10] sm:$0xff]
    %v243 = vld [vmem:[%s4 + $0x18] sm:$0xff]
    %v244 = vld [vmem:[%s4 + $0x20] sm:$0xff]
    %v245 = vld [vmem:[%s4 + $0x28] sm:$0xff]
    %v246 = vld [vmem:[%s4 + $0x30] sm:$0x3]
    %248 = vset.pattern.permute.xlu0 0
    %249 = vperm.xlu0 %248, %v240
    %v250 = vpop.permute.xlu0 %249
    %253 = vset.pattern.permute.xlu0 0
    %254 = vperm.xlu0 %253, %v241
    %v255 = vpop.permute.xlu0 %254
    %258 = vset.pattern.permute.xlu0 0
    %259 = vperm.xlu0 %258, %v242
    %v260 = vpop.permute.xlu0 %259
    %263 = vset.pattern.permute.xlu0 0
    %264 = vperm.xlu0 %263, %v243
    %v265 = vpop.permute.xlu0 %264
    %268 = vset.pattern.permute.xlu0 0
    %269 = vperm.xlu0 %268, %v244
    %v270 = vpop.permute.xlu0 %269
    %273 = vset.pattern.permute.xlu0 0
    %274 = vperm.xlu0 %273, %v245
    %v275 = vpop.permute.xlu0 %274
    %278 = vset.pattern.permute.xlu0 0
    %279 = vperm.xlu0 %278, %v246
    %v280 = vpop.permute.xlu0 %279
    %v289 = vunpack.c.l.b16 %v233
    %v290 = vunpack.c.l.b16 %v234
    %v291 = vunpack.c.l.b16 %v235
    %v292 = vunpack.c.l.b16 %v236
    %v293 = vunpack.c.l.b16 %v237
    %v294 = vunpack.c.l.b16 %v238
    %v295 = vunpack.c.l.b16 %v239
    %v296 = vpack.c.b16 %v290, %v289
    %v297 = vpack.c.b16 %v292, %v291
    %v298 = vpack.c.b16 %v294, %v293
    %v299 = vpack.c.b16 %v295, %v295
    %vm300 = vcmask 408576
    %v302 = vsel %vm300, %v296, 0
    %v305 = vsel %vm300, %v297, 0
    %v308 = vsel %vm300, %v298, 0
    %v311 = vsel %vm300, %v299, 0
    %vm313 = vcmask 1040384
    %v315 = vsel %vm313, %v232, 0
    %317 = vmatprep.subr.bf16.mxu0 0
    %318 = vmatpush1.bf16.msra.mxu0 0
    %319 = vmatprep.subr.bf16.mxu0 0
    %320 = vmatpush1.bf16.msra.mxu0 0
    %321 = vmatprep.subr.bf16.mxu0 0
    %322 = vmatpush1.bf16.msra.mxu0 0
    %323 = vmatprep.subr.bf16.mxu0 0
    %324 = vmatpush1.bf16.msra.mxu0 0
    %325 = vmatprep.subr.bf16.mxu0 0
    %326 = vmatpush1.bf16.msra.mxu0 %v315
    %327 = vmatprep.subr.bf16.mxu0 0
    %328 = vmatpush1.bf16.msra.mxu0 %v231
    %329 = vmatprep.subr.bf16.mxu0 0
    %330 = vmatpush1.bf16.msra.mxu0 %v230
    %331 = vmatprep.subr.bf16.mxu0 0
    %332 = vmatpush1.bf16.msra.mxu0 %v229
    %333 = vmatprep.subr.bf16.mxu0 0
    %334 = vmatpush2.bf16.msra.mxu0 0
    %335 = vmatprep.subr.bf16.mxu0 0
    %336 = vmatpush2.bf16.msra.mxu0 0
    %337 = vmatprep.subr.bf16.mxu0 0
    %338 = vmatpush2.bf16.msra.mxu0 0
    %339 = vmatprep.subr.bf16.mxu0 0
    %340 = vmatpush2.bf16.msra.mxu0 0
    %341 = vmatprep.subr.bf16.mxu0 0
    %342 = vmatpush2.bf16.msra.mxu0 0
    %343 = vmatprep.subr.bf16.mxu0 0
    %344 = vmatpush2.bf16.msra.mxu0 0
    %345 = vmatprep.subr.bf16.mxu0 0
    %346 = vmatpush2.bf16.msra.mxu0 0
    %347 = vmatprep.subr.bf16.mxu0 0
    %348 = vmatpush2.bf16.msra.mxu0 0
    %349 = vmatprep.mubr.bf16.mxu0 0
    %350 = vmatmul.mubr.bf16.gmra.mxu0 %v302
    %v351 = vpop.f32.mrf.mxu0
    %v352 = vadd.f32 %v250, %v351
    %v353 = vpop.f32.mrf.mxu0
    %v354 = vpop.f32.mrf.mxu0
    %v355 = vadd.f32 %v255, %v354
    %v356 = vpop.f32.mrf.mxu0
    %357 = vmatprep.mubr.bf16.mxu0 0
    %358 = vmatmul.mubr.bf16.gmra.mxu0 %v305
    %v359 = vpop.f32.mrf.mxu0
    %v360 = vadd.f32 %v260, %v359
    %v361 = vpop.f32.mrf.mxu0
    %v362 = vpop.f32.mrf.mxu0
    %v363 = vadd.f32 %v265, %v362
    %v364 = vpop.f32.mrf.mxu0
    %365 = vmatprep.mubr.bf16.mxu0 0
    %366 = vmatmul.mubr.bf16.gmra.mxu0 %v308
    %v367 = vpop.f32.mrf.mxu0
    %v368 = vadd.f32 %v270, %v367
    %v369 = vpop.f32.mrf.mxu0
    %v370 = vpop.f32.mrf.mxu0
    %v371 = vadd.f32 %v275, %v370
    %v372 = vpop.f32.mrf.mxu0
    %373 = vmatprep.mubr.bf16.mxu0 0
    %374 = vmatmul.mubr.bf16.gmra.mxu0 %v311
    %v375 = vpop.f32.mrf.mxu0
    %v376 = vadd.f32 %v280, %v375
    %v377 = vpop.f32.mrf.mxu0
    %v378 = vpop.f32.mrf.mxu0
    %v379 = vpop.f32.mrf.mxu0
    %380 = vdwg.mxu0
    %v381 = vmax.f32 %v352, 0.0
    %v382 = vmax.f32 %v355, 0.0
    %v383 = vmax.f32 %v360, 0.0
    %v384 = vmax.f32 %v363, 0.0
    %v385 = vmax.f32 %v368, 0.0
    %v386 = vmax.f32 %v371, 0.0
    %v387 = vmax.f32 %v376, 0.0
    %v388 = vpack.c.bf16 %v382, %v381
    %v389 = vpack.c.bf16 %v384, %v383
    %v390 = vpack.c.bf16 %v386, %v385
    %v391 = vpack.c.bf16 %v387, %v387
    %v392 = vld [vmem:[%s5] sm:$0x1]
    %v393 = vld [vmem:[#allocation2] sm:$0x1]
    %395 = vset.pattern.permute.xlu0 0
    %396 = vperm.xlu0 %395, %v393
    %v397 = vpop.permute.xlu0 %396
    %v399 = vlaneseq
    %v400 = vshrl.u32 %v399, 7
    %v401 = vsub.s32 0, %v400
    %v402 = vrot.slane %v397, %v401
    %v404 = vsel %vm300, %v392, 0
    %v407 = vsel %vm313, %v391, 0
    %409 = vmatprep.subr.bf16.mxu0 0
    %410 = vmatpush1.bf16.msra.mxu0 0
    %411 = vmatprep.subr.bf16.mxu0 0
    %412 = vmatpush1.bf16.msra.mxu0 0
    %413 = vmatprep.subr.bf16.mxu0 0
    %414 = vmatpush1.bf16.msra.mxu0 0
    %415 = vmatprep.subr.bf16.mxu0 0
    %416 = vmatpush1.bf16.msra.mxu0 0
    %417 = vmatprep.subr.bf16.mxu0 0
    %418 = vmatpush1.bf16.msra.mxu0 %v407
    %419 = vmatprep.subr.bf16.mxu0 0
    %420 = vmatpush1.bf16.msra.mxu0 %v390
    %421 = vmatprep.subr.bf16.mxu0 0
    %422 = vmatpush1.bf16.msra.mxu0 %v389
    %423 = vmatprep.subr.bf16.mxu0 0
    %424 = vmatpush1.bf16.msra.mxu0 %v388
    %425 = vmatprep.subr.bf16.mxu0 0
    %426 = vmatpush2.bf16.msra.mxu0 0
    %427 = vmatprep.subr.bf16.mxu0 0
    %428 = vmatpush2.bf16.msra.mxu0 0
    %429 = vmatprep.subr.bf16.mxu0 0
    %430 = vmatpush2.bf16.msra.mxu0 0
    %431 = vmatprep.subr.bf16.mxu0 0
    %432 = vmatpush2.bf16.msra.mxu0 0
    %433 = vmatprep.subr.bf16.mxu0 0
    %434 = vmatpush2.bf16.msra.mxu0 0
    %435 = vmatprep.subr.bf16.mxu0 0
    %436 = vmatpush2.bf16.msra.mxu0 0
    %437 = vmatprep.subr.bf16.mxu0 0
    %438 = vmatpush2.bf16.msra.mxu0 0
    %439 = vmatprep.subr.bf16.mxu0 0
    %440 = vmatpush2.bf16.msra.mxu0 0
    %441 = vmatprep.mubr.bf16.mxu0 0
    %442 = vmatmul.mubr.bf16.gmra.mxu0 %v404
    %v443 = vpop.f32.mrf.mxu0
    %v444 = vadd.f32 %v402, %v443
    %v445 = vpop.f32.mrf.mxu0
    %v446 = vpop.f32.mrf.mxu0
    %v447 = vpop.f32.mrf.mxu0
    %448 = vdwg.mxu0
    %v449 = vsub.f32 0.0, %v444
    %v450 = vmul.f32 %v449, 1.442695
    %v451 = vpow.pop %v450
    %v452 = vadd.f32 %v451, 1.0
    %v453 = vrcp.pop %v452
    %v454 = vmul.f32 1.0, %v453
    %455 = vst [vmem:[#allocation3] sm:$0x1] %v454
    // Predicated region
    $region30: #{tpu_custom_call.1} parent=1 // pred_check
      _
    $region31: #{tpu_custom_call.1} parent=1 // pred_check_branch
      %457 = sbr.rel (0) target = $region33
    $region32: #{tpu_custom_call.1} parent=1 // pred_region
      %s459 = ssub.s32 16, 16
      %460 = vsyncadd [#allocation4], %s459
      %s462 = sshll.u32 [#allocation3], 4
      %s463 = int_to_ptr.vmem [resolvable:$true] %s462
      %465 = dma.vmem_to_hbm [thread:$0]  %s463, 16, %s7, [#allocation4]
    $region33: #{tpu_custom_call.1} parent=1 // pred_fallthru
      _
    // Predicated region
    $region34: #{tpu_custom_call.1} parent=1 // pred_check
      _
    $region35: #{tpu_custom_call.1} parent=1 // pred_check_branch
      %467 = sbr.rel (0) target = $region37
    $region36: #{tpu_custom_call.1} parent=1 // pred_region
      %468 = dma.done [#allocation4], 16
    $region37: #{tpu_custom_call.1} parent=1 // pred_fallthru
      _
    %469 = vsyncpa [#allocation4], 1

</llo_original>
